<compile_context>
chip_gen: v7x
topology: tpu7x:2x2x1
jax: 0.10.0
libtpu: 0.0.40
codegen_flags: <defaults>
</compile_context>

<pallas_src>
import functools

import jax
import jax.numpy as jnp
from jax.experimental import pallas as pl
from jax.experimental.pallas import tpu as pltpu


LANE = 128      # vreg lane width — every feature dim is padded to this
SUB = 8         # sublane granularity — batch padded to a multiple of this
MAX_TB = 256    # batch tile rows per grid step (fills the 256-deep v6e/v7x MXU)


def _round_up(n: int, m: int) -> int:
    return (n + m - 1) // m * m


def simplenet_kernel(x_ref, w1_ref, b1_ref, w2_ref, b2_ref, w3_ref, b3_ref, o_ref):
    # Layer 1: bf16 x bf16 -> f32 accumulate on the MXU, bias add in f32.
    h1 = jnp.dot(x_ref[...], w1_ref[...], preferred_element_type=jnp.float32)
    h1 = h1 + b1_ref[...]                      # (TB, H1p) + (1, H1p)
    # Layer 2
    h2 = jnp.dot(h1.astype(jnp.bfloat16), w2_ref[...],
                 preferred_element_type=jnp.float32)
    h2 = h2 + b2_ref[...]
    # Layer 3
    y = jnp.dot(h2.astype(jnp.bfloat16), w3_ref[...],
                preferred_element_type=jnp.float32)
    y = y + b3_ref[...]
    o_ref[...] = y.astype(o_ref.dtype)


def prepare_params(params):
    """One-time conversion PyTorch layout -> kernel layout (call OUTSIDE the
    per-step jit so transposes/casts/padding never happen per forward call).

    In : w (out_features, in_features) f32, b (out_features,) f32
    Out: w (in_pad, out_pad) bf16 zero-padded, b (1, out_pad) f32 zero-padded.
    Padded rows/cols are exactly zero so padded lanes contribute nothing.
    """
    def prep_linear(w, b):
        out_f, in_f = w.shape
        in_p, out_p = _round_up(in_f, LANE), _round_up(out_f, LANE)
        wp = jnp.zeros((in_p, out_p), jnp.bfloat16)
        wp = wp.at[:in_f, :out_f].set(w.T.astype(jnp.bfloat16))
        bp = jnp.zeros((1, out_p), jnp.float32)
        bp = bp.at[0, :out_f].set(b.astype(jnp.float32))
        return wp, bp

    w1, b1 = prep_linear(params["w1"], params["b1"])
    w2, b2 = prep_linear(params["w2"], params["b2"])
    w3, b3 = prep_linear(params["w3"], params["b3"])
    return {"w1": w1, "b1": b1, "w2": w2, "b2": b2, "w3": w3, "b3": b3}


@functools.partial(jax.jit, static_argnames=("out_dim",))
def simplenet_forward(x, prep, *, out_dim):
    """x: (B, in_dim) float32. prep: output of prepare_params. Returns (B, out_dim)."""
    B, in_dim = x.shape
    w1, b1 = prep["w1"], prep["b1"]
    w2, b2 = prep["w2"], prep["b2"]
    w3, b3 = prep["w3"], prep["b3"]
    IN_P, H1_P = w1.shape
    H2_P = w2.shape[1]
    OUT_P = w3.shape[1]

    # Batch tiling: pad batch rows to a multiple of the tile.
    B8 = _round_up(B, SUB)
    TB = min(B8, MAX_TB)
    B_pad = _round_up(B8, TB)

    # Per-call input prep: cast activations to bf16 (halves DMA bytes) and
    # zero-pad to the lane-aligned, tile-aligned shape.
    x_p = jnp.zeros((B_pad, IN_P), jnp.bfloat16)
    x_p = x_p.at[:B, :in_dim].set(x.astype(jnp.bfloat16))

    # Weights/biases: constant index_map -> stay VMEM-resident, never re-DMA'd.
    def resident(shape):
        return pl.BlockSpec(shape, lambda i: (0, 0))

    y_pad = pl.pallas_call(
        simplenet_kernel,
        out_shape=jax.ShapeDtypeStruct((B_pad, OUT_P), jnp.float32),
        grid=(B_pad // TB,),
        in_specs=[
            pl.BlockSpec((TB, IN_P), lambda i: (i, 0)),   # x tiled over batch
            resident((IN_P, H1_P)), resident((1, H1_P)),
            resident((H1_P, H2_P)), resident((1, H2_P)),
            resident((H2_P, OUT_P)), resident((1, OUT_P)),
        ],
        out_specs=pl.BlockSpec((TB, OUT_P), lambda i: (i, 0)),
        compiler_params=pltpu.CompilerParams(
            dimension_semantics=("parallel",),       # shard batch tiles across TCs (v7x)
            vmem_limit_bytes=64 * 1024 * 1024,       # fits v7x's 64 MiB VMEM with headroom
        ),
    )(x_p, w1, b1, w2, b2, w3, b3)

    # Slice padded batch rows / output lanes back off.
    return y_pad[:B, :out_dim].astype(x.dtype)


def init_params(key, in_dim, n_hidden_1, n_hidden_2, out_dim, dtype=jnp.float32):
    """PyTorch nn.Linear default init: U(-1/sqrt(fan_in), 1/sqrt(fan_in))."""
    ks = jax.random.split(key, 6)

    def linear(kw, kb, fan_in, fan_out):
        bound = 1.0 / jnp.sqrt(jnp.float32(fan_in))
        w = jax.random.uniform(kw, (fan_out, fan_in), dtype, -bound, bound)
        b = jax.random.uniform(kb, (fan_out,), dtype, -bound, bound)
        return w, b

    w1, b1 = linear(ks[0], ks[1], in_dim, n_hidden_1)
    w2, b2 = linear(ks[2], ks[3], n_hidden_1, n_hidden_2)
    w3, b3 = linear(ks[4], ks[5], n_hidden_2, out_dim)
    return {"w1": w1, "b1": b1, "w2": w2, "b2": b2, "w3": w3, "b3": b3}


if __name__ == "__main__":
    # Small shapes consistent with the module: batch=8, in_dim=32, H1=H2=64, out=16.
    # NOTE: at this toy size XLA alone would be break-even; the kernel is
    # structured (batch grid, resident weights, 128-lane padding) so it scales.
    B, in_dim, H1, H2, out_dim = 8, 32, 64, 64, 16

    key = jax.random.PRNGKey(0)
    k_x, k_p = jax.random.split(key)
    x = jax.random.normal(k_x, (B, in_dim), dtype=jnp.float32)
    params = init_params(k_p, in_dim, H1, H2, out_dim)

    prep = prepare_params(params)               # one-time layout conversion
    prep = jax.tree_util.tree_map(jax.block_until_ready, prep)

    y = simplenet_forward(x, prep, out_dim=out_dim)
    y = jax.block_until_ready(y)

    # Reference in plain f32 JAX (same math as the PyTorch forward).
    ref = x @ params["w1"].T + params["b1"]
    ref = ref @ params["w2"].T + params["b2"]
    ref = ref @ params["w3"].T + params["b3"]

    assert y.shape == (B, out_dim)
    # bf16 operands with f32 accumulation -> loosened tolerance.
    assert jnp.allclose(y, ref, atol=5e-2, rtol=5e-2), float(jnp.max(jnp.abs(y - ref)))

    print("KERNEL_OK")
</pallas_src>

<mosaic_0001>
module attributes {stable_mosaic.version = 11 : i64} {
  func.func @simplenet_kernel(%arg0: i32, %arg1: memref<8x128xbf16, #tpu.memory_space<vmem>>, %arg2: memref<128x128xbf16, #tpu.memory_space<vmem>>, %arg3: memref<1x128xf32, #tpu.memory_space<vmem>>, %arg4: memref<128x128xbf16, #tpu.memory_space<vmem>>, %arg5: memref<1x128xf32, #tpu.memory_space<vmem>>, %arg6: memref<128x128xbf16, #tpu.memory_space<vmem>>, %arg7: memref<1x128xf32, #tpu.memory_space<vmem>>, %arg8: memref<8x128xf32, #tpu.memory_space<vmem>>) attributes {dimension_semantics = [#tpu.dimension_semantics<parallel>], iteration_bounds = array<i64: 1>, scalar_prefetch = 0 : i64, scratch_operands = 0 : i64, tpu.core_type = #tpu.core_type<tc>, window_params = [{transform_indices = @transform_0, window_bounds = array<i64: 8, 128>}, {pipeline_mode = #tpu.pipeline_mode<synchronous>, transform_indices = @transform_1, window_bounds = array<i64: 128, 128>}, {pipeline_mode = #tpu.pipeline_mode<synchronous>, transform_indices = @transform_2, window_bounds = array<i64: 1, 128>}, {pipeline_mode = #tpu.pipeline_mode<synchronous>, transform_indices = @transform_3, window_bounds = array<i64: 128, 128>}, {pipeline_mode = #tpu.pipeline_mode<synchronous>, transform_indices = @transform_4, window_bounds = array<i64: 1, 128>}, {pipeline_mode = #tpu.pipeline_mode<synchronous>, transform_indices = @transform_5, window_bounds = array<i64: 128, 128>}, {pipeline_mode = #tpu.pipeline_mode<synchronous>, transform_indices = @transform_6, window_bounds = array<i64: 1, 128>}, {transform_indices = @transform_7, window_bounds = array<i64: 8, 128>}]} {
    %c0 = arith.constant 0 : index
    %c0_0 = arith.constant 0 : index
    %0 = vector.load %arg1[%c0, %c0_0] : memref<8x128xbf16, #tpu.memory_space<vmem>>, vector<8x128xbf16>
    %c0_1 = arith.constant 0 : index
    %c0_2 = arith.constant 0 : index
    %1 = vector.load %arg2[%c0_1, %c0_2] : memref<128x128xbf16, #tpu.memory_space<vmem>>, vector<128x128xbf16>
    %cst = arith.constant dense<0.000000e+00> : vector<8x128xf32>
    %2 = tpu.matmul %0, %1, %cst {dimension_numbers = #tpu.dot_dimension_numbers<[1], [0], [0], [1], [0, 0, 1, 1], [], []>} : vector<8x128xbf16>, vector<128x128xbf16>, vector<8x128xf32> -> vector<8x128xf32>
    %c0_3 = arith.constant 0 : index
    %c0_4 = arith.constant 0 : index
    %3 = vector.load %arg3[%c0_3, %c0_4] : memref<1x128xf32, #tpu.memory_space<vmem>>, vector<1x128xf32>
    %4 = vector.broadcast %3 : vector<1x128xf32> to vector<8x128xf32>
    %5 = arith.addf %2, %4 : vector<8x128xf32>
    %6 = arith.truncf %5 : vector<8x128xf32> to vector<8x128xbf16>
    %c0_5 = arith.constant 0 : index
    %c0_6 = arith.constant 0 : index
    %7 = vector.load %arg4[%c0_5, %c0_6] : memref<128x128xbf16, #tpu.memory_space<vmem>>, vector<128x128xbf16>
    %cst_7 = arith.constant dense<0.000000e+00> : vector<8x128xf32>
    %8 = tpu.matmul %6, %7, %cst_7 {dimension_numbers = #tpu.dot_dimension_numbers<[1], [0], [0], [1], [0, 0, 1, 1], [], []>} : vector<8x128xbf16>, vector<128x128xbf16>, vector<8x128xf32> -> vector<8x128xf32>
    %c0_8 = arith.constant 0 : index
    %c0_9 = arith.constant 0 : index
    %9 = vector.load %arg5[%c0_8, %c0_9] : memref<1x128xf32, #tpu.memory_space<vmem>>, vector<1x128xf32>
    %10 = vector.broadcast %9 : vector<1x128xf32> to vector<8x128xf32>
    %11 = arith.addf %8, %10 : vector<8x128xf32>
    %12 = arith.truncf %11 : vector<8x128xf32> to vector<8x128xbf16>
    %c0_10 = arith.constant 0 : index
    %c0_11 = arith.constant 0 : index
    %13 = vector.load %arg6[%c0_10, %c0_11] : memref<128x128xbf16, #tpu.memory_space<vmem>>, vector<128x128xbf16>
    %cst_12 = arith.constant dense<0.000000e+00> : vector<8x128xf32>
    %14 = tpu.matmul %12, %13, %cst_12 {dimension_numbers = #tpu.dot_dimension_numbers<[1], [0], [0], [1], [0, 0, 1, 1], [], []>} : vector<8x128xbf16>, vector<128x128xbf16>, vector<8x128xf32> -> vector<8x128xf32>
    %c0_13 = arith.constant 0 : index
    %c0_14 = arith.constant 0 : index
    %15 = vector.load %arg7[%c0_13, %c0_14] : memref<1x128xf32, #tpu.memory_space<vmem>>, vector<1x128xf32>
    %16 = vector.broadcast %15 : vector<1x128xf32> to vector<8x128xf32>
    %17 = arith.addf %14, %16 : vector<8x128xf32>
    %c0_15 = arith.constant 0 : index
    %c0_16 = arith.constant 0 : index
    %18 = vector.load %arg8[%c0_15, %c0_16] : memref<8x128xf32, #tpu.memory_space<vmem>>, vector<8x128xf32>
    tpu.vector_store %arg8[%c0_15, %c0_16], %17 {strides = array<i32>} : memref<8x128xf32, #tpu.memory_space<vmem>>, vector<8x128xf32>,
    return
  }
  func.func @transform_0(%arg0: i32) -> (i32, i32) {
    %c0_i32 = arith.constant 0 : i32
    %c0_i32_0 = arith.constant 0 : i32
    return %arg0, %c0_i32 : i32, i32
  }
  func.func @transform_1(%arg0: i32) -> (i32, i32) {
    %c0_i32 = arith.constant 0 : i32
    %c0_i32_0 = arith.constant 0 : i32
    %c0_i32_1 = arith.constant 0 : i32
    return %c0_i32, %c0_i32_0 : i32, i32
  }
  func.func @transform_2(%arg0: i32) -> (i32, i32) {
    %c0_i32 = arith.constant 0 : i32
    %c0_i32_0 = arith.constant 0 : i32
    %c0_i32_1 = arith.constant 0 : i32
    return %c0_i32, %c0_i32_0 : i32, i32
  }
  func.func @transform_3(%arg0: i32) -> (i32, i32) {
    %c0_i32 = arith.constant 0 : i32
    %c0_i32_0 = arith.constant 0 : i32
    %c0_i32_1 = arith.constant 0 : i32
    return %c0_i32, %c0_i32_0 : i32, i32
  }
  func.func @transform_4(%arg0: i32) -> (i32, i32) {
    %c0_i32 = arith.constant 0 : i32
    %c0_i32_0 = arith.constant 0 : i32
    %c0_i32_1 = arith.constant 0 : i32
    return %c0_i32, %c0_i32_0 : i32, i32
  }
  func.func @transform_5(%arg0: i32) -> (i32, i32) {
    %c0_i32 = arith.constant 0 : i32
    %c0_i32_0 = arith.constant 0 : i32
    %c0_i32_1 = arith.constant 0 : i32
    return %c0_i32, %c0_i32_0 : i32, i32
  }
  func.func @transform_6(%arg0: i32) -> (i32, i32) {
    %c0_i32 = arith.constant 0 : i32
    %c0_i32_0 = arith.constant 0 : i32
    %c0_i32_1 = arith.constant 0 : i32
    return %c0_i32, %c0_i32_0 : i32, i32
  }
  func.func @transform_7(%arg0: i32) -> (i32, i32) {
    %c0_i32 = arith.constant 0 : i32
    %c0_i32_0 = arith.constant 0 : i32
    return %arg0, %c0_i32 : i32, i32
  }
}

</mosaic_0001>

<llo_original>
// kernel: simplenet_forward.1
$region0: #{simplenet_forward.1}
  #allocation0 [shape = 'u32[]', space=smem, size = 0x4, offset = 0x4, fixed_abs, tag = 'smem constant byte address 0x4 - core index']
  #allocation1 [shape = 'u32[144,128]{1,0:T(1,128)}', space=vmem, size = 0x12000, scoped, tag = 'internal scratch']
  %s0 = inlined_call_operand.hbm [shape: bf16[8,128], index: 0, kind: input, shape index: {}]
  %s1 = inlined_call_operand.hbm [shape: bf16[128,128], index: 1, kind: input, shape index: {}]
  %s2 = inlined_call_operand.hbm [shape: f32[1,128], index: 2, kind: input, shape index: {}]
  %s3 = inlined_call_operand.hbm [shape: bf16[128,128], index: 3, kind: input, shape index: {}]
  %s4 = inlined_call_operand.hbm [shape: f32[1,128], index: 4, kind: input, shape index: {}]
  %s5 = inlined_call_operand.hbm [shape: bf16[128,128], index: 5, kind: input, shape index: {}]
  %s6 = inlined_call_operand.hbm [shape: f32[1,128], index: 6, kind: input, shape index: {}]
  %s7 = inlined_call_operand.hbm [shape: f32[8,128], index: 7, kind: output, shape index: {}]
  %s8 = sld [smem:[#allocation0]]
  $region66: #{simplenet_forward.1} parent=0
    _
  %s10 = ssub.s32 1, %s8
  %s11 = scalar_select 0, %s10, %s8
  $region1: #{simplenet_forward.1} parent=0
    #allocation2 [shape = 'u8[2048]{0}', space=vmem, size = 0x800, scoped, tag = 'input window, operand 0, single buffered']
    #allocation3 [shape = 's32[1]{0}', space=sflag, size = 0x4, scoped, tag = 'scoped memory for simplenet_forward.1']
    #allocation4 [shape = 's32[1]{0}', space=sflag, size = 0x4, scoped, tag = 'scoped memory for simplenet_forward.1']
    #allocation5 [shape = 'u8[32768]{0}', space=vmem, size = 0x8000, scoped, tag = 'input window, operand 1, single buffered']
    #allocation6 [shape = 's32[1]{0}', space=sflag, size = 0x4, scoped, tag = 'scoped memory for simplenet_forward.1']
    #allocation7 [shape = 'u8[512]{0}', space=vmem, size = 0x400, scoped, tag = 'input window, operand 2, single buffered']
    #allocation8 [shape = 'u8[32768]{0}', space=vmem, size = 0x8000, scoped, tag = 'input window, operand 3, single buffered']
    #allocation9 [shape = 's32[1]{0}', space=sflag, size = 0x4, scoped, tag = 'scoped memory for simplenet_forward.1']
    #allocation10 [shape = 'u8[512]{0}', space=vmem, size = 0x400, scoped, tag = 'input window, operand 4, single buffered']
    #allocation11 [shape = 'u8[32768]{0}', space=vmem, size = 0x8000, scoped, tag = 'input window, operand 5, single buffered']
    #allocation12 [shape = 's32[1]{0}', space=sflag, size = 0x4, scoped, tag = 'scoped memory for simplenet_forward.1']
    #allocation13 [shape = 'u8[512]{0}', space=vmem, size = 0x400, scoped, tag = 'input window, operand 6, single buffered']
    #allocation14 [shape = 'u8[4096]{0}', space=vmem, size = 0x1000, scoped, tag = 'output window, operand 0, single buffered']
    %12 = vsyncpa [#allocation3], 0
    %13 = vsyncpa [#allocation6], 0
    %14 = vsyncpa [#allocation9], 0
    %15 = vsyncpa [#allocation12], 0
    %16 = vsyncpa [#allocation4], 0
    // Predicated region
    $region2: #{simplenet_forward.1} parent=1 // pred_check
      _
    $region3: #{simplenet_forward.1} parent=1 // pred_check_branch
      %18 = sbr.rel (0) target = $region5
    $region4: #{simplenet_forward.1} parent=1 // pred_region
      %s20 = ssub.s32 64, 64
      %21 = vsyncadd [#allocation3], %s20
      %s23 = sshll.u32 [#allocation2], 4
      %s24 = int_to_ptr.vmem [resolvable:$true] %s23
      %26 = dma.hbm_to_vmem [thread:$0]  %s0, 64, %s24, [#allocation3]
    $region5: #{simplenet_forward.1} parent=1 // pred_fallthru
      _
    // Predicated region
    $region6: #{simplenet_forward.1} parent=1 // pred_check
      _
    $region7: #{simplenet_forward.1} parent=1 // pred_check_branch
      %28 = sbr.rel (0) target = $region9
    $region8: #{simplenet_forward.1} parent=1 // pred_region
      %s30 = ssub.s32 1024, 1024
      %31 = vsyncadd [#allocation6], %s30
      %s32 = sshll.u32 [#allocation5], 4
      %s33 = int_to_ptr.vmem [resolvable:$true] %s32
      %38 = dma.hbm_to_vmem [thread:$0]  %s1, 1024, %s33, [#allocation6], 64, 64, 4
    $region9: #{simplenet_forward.1} parent=1 // pred_fallthru
      _
    // Predicated region
    $region10: #{simplenet_forward.1} parent=1 // pred_check
      _
    $region11: #{simplenet_forward.1} parent=1 // pred_check_branch
      %40 = sbr.rel (0) target = $region13
    $region12: #{simplenet_forward.1} parent=1 // pred_region
      %s42 = ssub.s32 16, 16
      %43 = vsyncadd [#allocation6], %s42
      %s45 = sshll.u32 [#allocation7], 4
      %s46 = int_to_ptr.vmem [resolvable:$true] %s45
      %48 = dma.hbm_to_vmem [thread:$0]  %s2, 16, %s46, [#allocation6]
    $region13: #{simplenet_forward.1} parent=1 // pred_fallthru
      _
    // Predicated region
    $region14: #{simplenet_forward.1} parent=1 // pred_check
      _
    $region15: #{simplenet_forward.1} parent=1 // pred_check_branch
      %50 = sbr.rel (0) target = $region17
    $region16: #{simplenet_forward.1} parent=1 // pred_region
      %s52 = ssub.s32 1024, 1024
      %53 = vsyncadd [#allocation9], %s52
      %s54 = sshll.u32 [#allocation8], 4
      %s55 = int_to_ptr.vmem [resolvable:$true] %s54
      %60 = dma.hbm_to_vmem [thread:$0]  %s3, 1024, %s55, [#allocation9], 64, 64, 4
    $region17: #{simplenet_forward.1} parent=1 // pred_fallthru
      _
    // Predicated region
    $region18: #{simplenet_forward.1} parent=1 // pred_check
      _
    $region19: #{simplenet_forward.1} parent=1 // pred_check_branch
      %62 = sbr.rel (0) target = $region21
    $region20: #{simplenet_forward.1} parent=1 // pred_region
      %s64 = ssub.s32 16, 16
      %65 = vsyncadd [#allocation9], %s64
      %s67 = sshll.u32 [#allocation10], 4
      %s68 = int_to_ptr.vmem [resolvable:$true] %s67
      %70 = dma.hbm_to_vmem [thread:$0]  %s4, 16, %s68, [#allocation9]
    $region21: #{simplenet_forward.1} parent=1 // pred_fallthru
      _
    // Predicated region
    $region22: #{simplenet_forward.1} parent=1 // pred_check
      _
    $region23: #{simplenet_forward.1} parent=1 // pred_check_branch
      %72 = sbr.rel (0) target = $region25
    $region24: #{simplenet_forward.1} parent=1 // pred_region
      %s74 = ssub.s32 1024, 1024
      %75 = vsyncadd [#allocation12], %s74
      %s76 = sshll.u32 [#allocation11], 4
      %s77 = int_to_ptr.vmem [resolvable:$true] %s76
      %82 = dma.hbm_to_vmem [thread:$0]  %s5, 1024, %s77, [#allocation12], 64, 64, 4
    $region25: #{simplenet_forward.1} parent=1 // pred_fallthru
      _
    // Predicated region
    $region26: #{simplenet_forward.1} parent=1 // pred_check
      _
    $region27: #{simplenet_forward.1} parent=1 // pred_check_branch
      %84 = sbr.rel (0) target = $region29
    $region28: #{simplenet_forward.1} parent=1 // pred_region
      %s86 = ssub.s32 16, 16
      %87 = vsyncadd [#allocation12], %s86
      %s89 = sshll.u32 [#allocation13], 4
      %s90 = int_to_ptr.vmem [resolvable:$true] %s89
      %92 = dma.hbm_to_vmem [thread:$0]  %s6, 16, %s90, [#allocation12]
    $region29: #{simplenet_forward.1} parent=1 // pred_fallthru
      _
    // Predicated region
    $region30: #{simplenet_forward.1} parent=1 // pred_check
      _
    $region31: #{simplenet_forward.1} parent=1 // pred_check_branch
      %94 = sbr.rel (0) target = $region33
    $region32: #{simplenet_forward.1} parent=1 // pred_region
      %95 = dma.done [#allocation3], 64
    $region33: #{simplenet_forward.1} parent=1 // pred_fallthru
      _
    // Predicated region
    $region34: #{simplenet_forward.1} parent=1 // pred_check
      _
    $region35: #{simplenet_forward.1} parent=1 // pred_check_branch
      %97 = sbr.rel (0) target = $region37
    $region36: #{simplenet_forward.1} parent=1 // pred_region
      %98 = dma.done [#allocation6], 1024
    $region37: #{simplenet_forward.1} parent=1 // pred_fallthru
      _
    // Predicated region
    $region38: #{simplenet_forward.1} parent=1 // pred_check
      _
    $region39: #{simplenet_forward.1} parent=1 // pred_check_branch
      %100 = sbr.rel (0) target = $region41
    $region40: #{simplenet_forward.1} parent=1 // pred_region
      %101 = dma.done [#allocation6], 16
    $region41: #{simplenet_forward.1} parent=1 // pred_fallthru
      _
    // Predicated region
    $region42: #{simplenet_forward.1} parent=1 // pred_check
      _
    $region43: #{simplenet_forward.1} parent=1 // pred_check_branch
      %103 = sbr.rel (0) target = $region45
    $region44: #{simplenet_forward.1} parent=1 // pred_region
      %104 = dma.done [#allocation9], 1024
    $region45: #{simplenet_forward.1} parent=1 // pred_fallthru
      _
    // Predicated region
    $region46: #{simplenet_forward.1} parent=1 // pred_check
      _
    $region47: #{simplenet_forward.1} parent=1 // pred_check_branch
      %106 = sbr.rel (0) target = $region49
    $region48: #{simplenet_forward.1} parent=1 // pred_region
      %107 = dma.done [#allocation9], 16
    $region49: #{simplenet_forward.1} parent=1 // pred_fallthru
      _
    // Predicated region
    $region50: #{simplenet_forward.1} parent=1 // pred_check
      _
    $region51: #{simplenet_forward.1} parent=1 // pred_check_branch
      %109 = sbr.rel (0) target = $region53
    $region52: #{simplenet_forward.1} parent=1 // pred_region
      %110 = dma.done [#allocation12], 1024
    $region53: #{simplenet_forward.1} parent=1 // pred_fallthru
      _
    // Predicated region
    $region54: #{simplenet_forward.1} parent=1 // pred_check
      _
    $region55: #{simplenet_forward.1} parent=1 // pred_check_branch
      %112 = sbr.rel (0) target = $region57
    $region56: #{simplenet_forward.1} parent=1 // pred_region
      %113 = dma.done [#allocation12], 16
    $region57: #{simplenet_forward.1} parent=1 // pred_fallthru
      _
    %v115 = vld [vmem:[#allocation2] sm:$0xf]
    %v116 = vld [vmem:[#allocation5] sm:$0xf]
    %v117 = vld [vmem:[#allocation5 + $0x4] sm:$0xf]
    %v118 = vld [vmem:[#allocation5 + $0x8] sm:$0xf]
    %v119 = vld [vmem:[#allocation5 + $0xc] sm:$0xf]
    %v120 = vld [vmem:[#allocation5 + $0x10] sm:$0xf]
    %v121 = vld [vmem:[#allocation5 + $0x14] sm:$0xf]
    %v122 = vld [vmem:[#allocation5 + $0x18] sm:$0xf]
    %v123 = vld [vmem:[#allocation5 + $0x1c] sm:$0xf]
    %v124 = vld [vmem:[#allocation5 + $0x20] sm:$0xf]
    %v125 = vld [vmem:[#allocation5 + $0x24] sm:$0xf]
    %v126 = vld [vmem:[#allocation5 + $0x28] sm:$0xf]
    %v127 = vld [vmem:[#allocation5 + $0x2c] sm:$0xf]
    %v128 = vld [vmem:[#allocation5 + $0x30] sm:$0xf]
    %v129 = vld [vmem:[#allocation5 + $0x34] sm:$0xf]
    %v130 = vld [vmem:[#allocation5 + $0x38] sm:$0xf]
    %v131 = vld [vmem:[#allocation5 + $0x3c] sm:$0xf]
    %v132 = vld [vmem:[#allocation7] sm:$0x1]
    %v134 = vlaneseq
    %v135 = vshrl.u32 %v134, 7
    %v136 = vsub.s32 0, %v135
    %v137 = vrot.slane %v132, %v136
    %v155 = vunpack.c.l.b16 %v116
    %v156 = vunpack.c.l.b16 %v117
    %v157 = vunpack.c.l.b16 %v118
    %v158 = vunpack.c.l.b16 %v119
    %v159 = vunpack.c.l.b16 %v120
    %v160 = vunpack.c.l.b16 %v121
    %v161 = vunpack.c.l.b16 %v122
    %v162 = vunpack.c.l.b16 %v123
    %v163 = vunpack.c.l.b16 %v124
    %v164 = vunpack.c.l.b16 %v125
    %v165 = vunpack.c.l.b16 %v126
    %v166 = vunpack.c.l.b16 %v127
    %v167 = vunpack.c.l.b16 %v128
    %v168 = vunpack.c.l.b16 %v129
    %v169 = vunpack.c.l.b16 %v130
    %v170 = vunpack.c.l.b16 %v131
    %v171 = vpack.c.b16 %v156, %v155
    %v172 = vpack.c.b16 %v158, %v157
    %v173 = vpack.c.b16 %v160, %v159
    %v174 = vpack.c.b16 %v162, %v161
    %v175 = vpack.c.b16 %v164, %v163
    %v176 = vpack.c.b16 %v166, %v165
    %v177 = vpack.c.b16 %v168, %v167
    %v178 = vpack.c.b16 %v170, %v169
    %187 = vmatprep.subr.bf16.mxu0 0
    %188 = vmatpush1.bf16.msra.mxu0 %v171
    %189 = vmatprep.subr.bf16.mxu0 0
    %190 = vmatpush1.bf16.msra.mxu0 %v172
    %191 = vmatprep.subr.bf16.mxu0 0
    %192 = vmatpush1.bf16.msra.mxu0 %v173
    %193 = vmatprep.subr.bf16.mxu0 0
    %194 = vmatpush1.bf16.msra.mxu0 %v174
    %195 = vmatprep.subr.bf16.mxu0 0
    %196 = vmatpush1.bf16.msra.mxu0 %v175
    %197 = vmatprep.subr.bf16.mxu0 0
    %198 = vmatpush1.bf16.msra.mxu0 %v176
    %199 = vmatprep.subr.bf16.mxu0 0
    %200 = vmatpush1.bf16.msra.mxu0 %v177
    %201 = vmatprep.subr.bf16.mxu0 0
    %202 = vmatpush1.bf16.msra.mxu0 %v178
    %203 = vmatprep.subr.bf16.mxu0 0
    %204 = vmatpush1.bf16.msra.mxu0 0
    %205 = vmatprep.subr.bf16.mxu0 0
    %206 = vmatpush1.bf16.msra.mxu0 0
    %207 = vmatprep.subr.bf16.mxu0 0
    %208 = vmatpush1.bf16.msra.mxu0 0
    %209 = vmatprep.subr.bf16.mxu0 0
    %210 = vmatpush1.bf16.msra.mxu0 0
    %211 = vmatprep.subr.bf16.mxu0 0
    %212 = vmatpush1.bf16.msra.mxu0 0
    %213 = vmatprep.subr.bf16.mxu0 0
    %214 = vmatpush1.bf16.msra.mxu0 0
    %215 = vmatprep.subr.bf16.mxu0 0
    %216 = vmatpush1.bf16.msra.mxu0 0
    %217 = vmatprep.subr.bf16.mxu0 0
    %218 = vmatpush1.bf16.msra.mxu0 0
    %219 = vmatprep.mubr.bf16.mxu0 0
    %220 = vmatmul.mubr.bf16.gmra.mrb[0].mxu0 %v115
    %v221 = vpop.f32.mrb[0].mxu0
    %v222 = vadd.f32 %v137, %v221
    %v223 = vpop.f32.mrb[0].mxu0
    %v224 = vpop.f32.mrb[0].mxu0
    %v225 = vpop.f32.mrb[0].mxu0
    %226 = vdwg.mxu0
    %v227 = vpack.c.bf16 %v222, %v222
    %v228 = vld [vmem:[#allocation8] sm:$0xf]
    %v229 = vld [vmem:[#allocation8 + $0x4] sm:$0xf]
    %v230 = vld [vmem:[#allocation8 + $0x8] sm:$0xf]
    %v231 = vld [vmem:[#allocation8 + $0xc] sm:$0xf]
    %v232 = vld [vmem:[#allocation8 + $0x10] sm:$0xf]
    %v233 = vld [vmem:[#allocation8 + $0x14] sm:$0xf]
    %v234 = vld [vmem:[#allocation8 + $0x18] sm:$0xf]
    %v235 = vld [vmem:[#allocation8 + $0x1c] sm:$0xf]
    %v236 = vld [vmem:[#allocation8 + $0x20] sm:$0xf]
    %v237 = vld [vmem:[#allocation8 + $0x24] sm:$0xf]
    %v238 = vld [vmem:[#allocation8 + $0x28] sm:$0xf]
    %v239 = vld [vmem:[#allocation8 + $0x2c] sm:$0xf]
    %v240 = vld [vmem:[#allocation8 + $0x30] sm:$0xf]
    %v241 = vld [vmem:[#allocation8 + $0x34] sm:$0xf]
    %v242 = vld [vmem:[#allocation8 + $0x38] sm:$0xf]
    %v243 = vld [vmem:[#allocation8 + $0x3c] sm:$0xf]
    %v244 = vld [vmem:[#allocation10] sm:$0x1]
    %v246 = vlaneseq
    %v247 = vshrl.u32 %v246, 7
    %v248 = vsub.s32 0, %v247
    %v249 = vrot.slane %v244, %v248
    %v267 = vunpack.c.l.b16 %v228
    %v268 = vunpack.c.l.b16 %v229
    %v269 = vunpack.c.l.b16 %v230
    %v270 = vunpack.c.l.b16 %v231
    %v271 = vunpack.c.l.b16 %v232
    %v272 = vunpack.c.l.b16 %v233
    %v273 = vunpack.c.l.b16 %v234
    %v274 = vunpack.c.l.b16 %v235
    %v275 = vunpack.c.l.b16 %v236
    %v276 = vunpack.c.l.b16 %v237
    %v277 = vunpack.c.l.b16 %v238
    %v278 = vunpack.c.l.b16 %v239
    %v279 = vunpack.c.l.b16 %v240
    %v280 = vunpack.c.l.b16 %v241
    %v281 = vunpack.c.l.b16 %v242
    %v282 = vunpack.c.l.b16 %v243
    %v283 = vpack.c.b16 %v268, %v267
    %v284 = vpack.c.b16 %v270, %v269
    %v285 = vpack.c.b16 %v272, %v271
    %v286 = vpack.c.b16 %v274, %v273
    %v287 = vpack.c.b16 %v276, %v275
    %v288 = vpack.c.b16 %v278, %v277
    %v289 = vpack.c.b16 %v280, %v279
    %v290 = vpack.c.b16 %v282, %v281
    %299 = vmatprep.subr.bf16.mxu0 0
    %300 = vmatpush1.bf16.msra.mxu0 %v283
    %301 = vmatprep.subr.bf16.mxu0 0
    %302 = vmatpush1.bf16.msra.mxu0 %v284
    %303 = vmatprep.subr.bf16.mxu0 0
    %304 = vmatpush1.bf16.msra.mxu0 %v285
    %305 = vmatprep.subr.bf16.mxu0 0
    %306 = vmatpush1.bf16.msra.mxu0 %v286
    %307 = vmatprep.subr.bf16.mxu0 0
    %308 = vmatpush1.bf16.msra.mxu0 %v287
    %309 = vmatprep.subr.bf16.mxu0 0
    %310 = vmatpush1.bf16.msra.mxu0 %v288
    %311 = vmatprep.subr.bf16.mxu0 0
    %312 = vmatpush1.bf16.msra.mxu0 %v289
    %313 = vmatprep.subr.bf16.mxu0 0
    %314 = vmatpush1.bf16.msra.mxu0 %v290
    %315 = vmatprep.subr.bf16.mxu0 0
    %316 = vmatpush1.bf16.msra.mxu0 0
    %317 = vmatprep.subr.bf16.mxu0 0
    %318 = vmatpush1.bf16.msra.mxu0 0
    %319 = vmatprep.subr.bf16.mxu0 0
    %320 = vmatpush1.bf16.msra.mxu0 0
    %321 = vmatprep.subr.bf16.mxu0 0
    %322 = vmatpush1.bf16.msra.mxu0 0
    %323 = vmatprep.subr.bf16.mxu0 0
    %324 = vmatpush1.bf16.msra.mxu0 0
    %325 = vmatprep.subr.bf16.mxu0 0
    %326 = vmatpush1.bf16.msra.mxu0 0
    %327 = vmatprep.subr.bf16.mxu0 0
    %328 = vmatpush1.bf16.msra.mxu0 0
    %329 = vmatprep.subr.bf16.mxu0 0
    %330 = vmatpush1.bf16.msra.mxu0 0
    %331 = vmatprep.mubr.bf16.mxu0 0
    %332 = vmatmul.mubr.bf16.gmra.mrb[0].mxu0 %v227
    %v333 = vpop.f32.mrb[0].mxu0
    %v334 = vadd.f32 %v249, %v333
    %v335 = vpop.f32.mrb[0].mxu0
    %v336 = vpop.f32.mrb[0].mxu0
    %v337 = vpop.f32.mrb[0].mxu0
    %338 = vdwg.mxu0
    %v339 = vpack.c.bf16 %v334, %v334
    %v340 = vld [vmem:[#allocation11] sm:$0xf]
    %v341 = vld [vmem:[#allocation11 + $0x4] sm:$0xf]
    %v342 = vld [vmem:[#allocation11 + $0x8] sm:$0xf]
    %v343 = vld [vmem:[#allocation11 + $0xc] sm:$0xf]
    %v344 = vld [vmem:[#allocation11 + $0x10] sm:$0xf]
    %v345 = vld [vmem:[#allocation11 + $0x14] sm:$0xf]
    %v346 = vld [vmem:[#allocation11 + $0x18] sm:$0xf]
    %v347 = vld [vmem:[#allocation11 + $0x1c] sm:$0xf]
    %v348 = vld [vmem:[#allocation11 + $0x20] sm:$0xf]
    %v349 = vld [vmem:[#allocation11 + $0x24] sm:$0xf]
    %v350 = vld [vmem:[#allocation11 + $0x28] sm:$0xf]
    %v351 = vld [vmem:[#allocation11 + $0x2c] sm:$0xf]
    %v352 = vld [vmem:[#allocation11 + $0x30] sm:$0xf]
    %v353 = vld [vmem:[#allocation11 + $0x34] sm:$0xf]
    %v354 = vld [vmem:[#allocation11 + $0x38] sm:$0xf]
    %v355 = vld [vmem:[#allocation11 + $0x3c] sm:$0xf]
    %v356 = vld [vmem:[#allocation13] sm:$0x1]
    %v358 = vlaneseq
    %v359 = vshrl.u32 %v358, 7
    %v360 = vsub.s32 0, %v359
    %v361 = vrot.slane %v356, %v360
    %v379 = vunpack.c.l.b16 %v340
    %v380 = vunpack.c.l.b16 %v341
    %v381 = vunpack.c.l.b16 %v342
    %v382 = vunpack.c.l.b16 %v343
    %v383 = vunpack.c.l.b16 %v344
    %v384 = vunpack.c.l.b16 %v345
    %v385 = vunpack.c.l.b16 %v346
    %v386 = vunpack.c.l.b16 %v347
    %v387 = vunpack.c.l.b16 %v348
    %v388 = vunpack.c.l.b16 %v349
    %v389 = vunpack.c.l.b16 %v350
    %v390 = vunpack.c.l.b16 %v351
    %v391 = vunpack.c.l.b16 %v352
    %v392 = vunpack.c.l.b16 %v353
    %v393 = vunpack.c.l.b16 %v354
    %v394 = vunpack.c.l.b16 %v355
    %v395 = vpack.c.b16 %v380, %v379
    %v396 = vpack.c.b16 %v382, %v381
    %v397 = vpack.c.b16 %v384, %v383
    %v398 = vpack.c.b16 %v386, %v385
    %v399 = vpack.c.b16 %v388, %v387
    %v400 = vpack.c.b16 %v390, %v389
    %v401 = vpack.c.b16 %v392, %v391
    %v402 = vpack.c.b16 %v394, %v393
    %411 = vmatprep.subr.bf16.mxu0 0
    %412 = vmatpush1.bf16.msra.mxu0 %v395
    %413 = vmatprep.subr.bf16.mxu0 0
    %414 = vmatpush1.bf16.msra.mxu0 %v396
    %415 = vmatprep.subr.bf16.mxu0 0
    %416 = vmatpush1.bf16.msra.mxu0 %v397
    %417 = vmatprep.subr.bf16.mxu0 0
    %418 = vmatpush1.bf16.msra.mxu0 %v398
    %419 = vmatprep.subr.bf16.mxu0 0
    %420 = vmatpush1.bf16.msra.mxu0 %v399
    %421 = vmatprep.subr.bf16.mxu0 0
    %422 = vmatpush1.bf16.msra.mxu0 %v400
    %423 = vmatprep.subr.bf16.mxu0 0
    %424 = vmatpush1.bf16.msra.mxu0 %v401
    %425 = vmatprep.subr.bf16.mxu0 0
    %426 = vmatpush1.bf16.msra.mxu0 %v402
    %427 = vmatprep.subr.bf16.mxu0 0
    %428 = vmatpush1.bf16.msra.mxu0 0
    %429 = vmatprep.subr.bf16.mxu0 0
    %430 = vmatpush1.bf16.msra.mxu0 0
    %431 = vmatprep.subr.bf16.mxu0 0
    %432 = vmatpush1.bf16.msra.mxu0 0
    %433 = vmatprep.subr.bf16.mxu0 0
    %434 = vmatpush1.bf16.msra.mxu0 0
    %435 = vmatprep.subr.bf16.mxu0 0
    %436 = vmatpush1.bf16.msra.mxu0 0
    %437 = vmatprep.subr.bf16.mxu0 0
    %438 = vmatpush1.bf16.msra.mxu0 0
    %439 = vmatprep.subr.bf16.mxu0 0
    %440 = vmatpush1.bf16.msra.mxu0 0
    %441 = vmatprep.subr.bf16.mxu0 0
    %442 = vmatpush1.bf16.msra.mxu0 0
    %443 = vmatprep.mubr.bf16.mxu0 0
    %444 = vmatmul.mubr.bf16.gmra.mrb[0].mxu0 %v339
    %v445 = vpop.f32.mrb[0].mxu0
    %v446 = vadd.f32 %v361, %v445
    %v447 = vpop.f32.mrb[0].mxu0
    %v448 = vpop.f32.mrb[0].mxu0
    %v449 = vpop.f32.mrb[0].mxu0
    %450 = vdwg.mxu0
    %451 = vst [vmem:[#allocation14] sm:$0xff] %v446
    // Predicated region
    $region58: #{simplenet_forward.1} parent=1 // pred_check
      _
    $region59: #{simplenet_forward.1} parent=1 // pred_check_branch
      %453 = sbr.rel (0) target = $region61
    $region60: #{simplenet_forward.1} parent=1 // pred_region
      %s455 = ssub.s32 128, 128
      %456 = vsyncadd [#allocation4], %s455
      %s458 = sshll.u32 [#allocation14], 4
      %s459 = int_to_ptr.vmem [resolvable:$true] %s458
      %461 = dma.vmem_to_hbm [thread:$0]  %s459, 128, %s7, [#allocation4]
    $region61: #{simplenet_forward.1} parent=1 // pred_fallthru
      _
    // Predicated region
    $region62: #{simplenet_forward.1} parent=1 // pred_check
      _
    $region63: #{simplenet_forward.1} parent=1 // pred_check_branch
      %463 = sbr.rel (0) target = $region65
    $region64: #{simplenet_forward.1} parent=1 // pred_region
      %464 = dma.done [#allocation4], 128
    $region65: #{simplenet_forward.1} parent=1 // pred_fallthru
      _
    %465 = vsyncpa [#allocation3], 1
    %466 = vsyncpa [#allocation6], 1
    %467 = vsyncpa [#allocation9], 1
    %468 = vsyncpa [#allocation12], 1
    %469 = vsyncpa [#allocation4], 1

</llo_original>
